<compile_context>
chip_gen: v7x
topology: tpu7x:2x2x1
jax: 0.10.0
libtpu: 0.0.40
codegen_flags: <defaults>
</compile_context>

<pallas_src>
import jax
import jax.numpy as jnp
from jax.experimental import pallas as pl
from jax.experimental.pallas import tpu as pltpu

MAX_POSITION_INDEX = 100
TABLE_ROWS = 2 * MAX_POSITION_INDEX + 1          # 201
N_FUSED = ((2 * TABLE_ROWS + 127) // 128) * 128  # 512 lane-aligned fused table rows


def _build_pos_table(embed_dim: int) -> jnp.ndarray:
    """Deterministic sinusoidal table, identical to the PyTorch __init__."""
    half = embed_dim // 2
    X = jnp.arange(-MAX_POSITION_INDEX, MAX_POSITION_INDEX + 1,
                   dtype=jnp.float32).reshape(-1, 1)                      # (201, 1)
    freqs = jnp.arange(0, half, 2, dtype=jnp.float32) / float(half)       # (half//2,)
    X = X / jnp.power(10000.0, freqs)                                     # (201, half//2)
    table = jnp.zeros((TABLE_ROWS, half), dtype=jnp.float32)
    table = table.at[:, 0::2].set(jnp.sin(X))
    table = table.at[:, 1::2].set(jnp.cos(X))
    return table


def _pos_embed_kernel(idx_ref, x_ref, table_ref, o_ref):
    # idx_ref:   (TB, S, 2)          int32   pre-rounded / pre-offset / sentinel-
    #                                        ized indices into the fused table;
    #                                        row 0 holds -1 (class token -> zero).
    # x_ref:     (TB, S, D)          x.dtype
    # table_ref: (P, N_FUSED, D)     bf16    block-diagonal [[T,0],[0,T]] planes
    #                                        (P=1 for bf16 x, P=3 bf16x3 for f32 x)
    # o_ref:     (TB, S, D)          x.dtype
    tb, s, d = x_ref.shape
    rows = tb * s
    n_planes, n_rows, _ = table_ref.shape

    # ---- one fused one-hot over all TB*S rows (iota built once, no unroll) ----
    idx = idx_ref[...].reshape(rows, 2)                                   # (rows, 2)
    iota = jax.lax.broadcasted_iota(jnp.int32, (rows, n_rows), 1)         # (rows, 512)
    match = jnp.logical_or(iota == idx[:, 0:1], iota == idx[:, 1:2])
    # bool -> f32 -> bf16 (0/1 exact in bf16); bf16 operands hit the fast MXU path.
    oh = match.astype(jnp.float32).astype(jnp.bfloat16)                   # (rows, 512)

    # One (rows, 512) x (512, D) matmul per table plane, accumulated in f32.
    # (Splitting the block-diagonal into two 256-deep matmuls is not worth it:
    #  with bf16 operands the kernel is HBM-bound, not MXU-bound.)
    pe = jnp.dot(oh, table_ref[0], preferred_element_type=jnp.float32)    # (rows, D)
    for p in range(1, n_planes):          # static unroll (at most 2 extra matmuls)
        pe = pe + jnp.dot(oh, table_ref[p], preferred_element_type=jnp.float32)
    pe = pe.reshape(tb, s, d)

    # dropout is identity in eval mode (matches module.eval())
    if o_ref.dtype == jnp.bfloat16:
        # native bf16 add on v6e/v7x (Mosaic emulates on v5e); halves vreg width.
        o_ref[...] = x_ref[...] + pe.astype(jnp.bfloat16)
    else:
        o_ref[...] = (x_ref[...].astype(jnp.float32) + pe).astype(o_ref.dtype)


def _vmem_budget_bytes() -> int:
    """Generation-aware scoped-VMEM budget: ~half of physical VMEM
    (64 MiB on v5e/v6e with 128 MiB, 32 MiB on v7x with 64 MiB)."""
    cap = 64 << 20
    try:
        info = pltpu.get_tpu_info()
        cap = int(getattr(info, "vmem_capacity_bytes", cap))
    except Exception:
        pass
    return int(min(max(cap // 2, 16 << 20), 64 << 20))


def _choose_tb(B: int, S: int, D: int, x_itemsize: int,
               n_planes: int, budget_bytes: int) -> int:
    """Largest batch tile that (a) divides B, (b) fits the VMEM budget with full
    accounting (double-buffered x/out/idx blocks, double-buffered constant table,
    one-hot + f32 temporaries), and (c) leaves >= 2 grid steps when possible
    (v7x megacore sharding)."""
    table_bytes = 2 * n_planes * N_FUSED * D * 2   # constant table, 2 buffers, bf16

    def fits(tb: int) -> bool:
        rows = tb * S
        use = (2 * tb * S * D * x_itemsize          # x block, double-buffered
               + 2 * tb * S * D * x_itemsize        # out block, double-buffered
               + 2 * tb * S * 2 * 4                 # idx block, double-buffered
               + rows * N_FUSED * 8                 # iota / one-hot intermediates
               + rows * D * 4                       # f32 pe
               + rows * D * 4                       # f32 upcast temp for the add
               + table_bytes)
        return use <= int(budget_bytes * 0.8)       # headroom for spills/metadata

    best = 1
    for tb in range(1, B + 1):
        if B % tb == 0 and fits(tb):
            best = tb
    if B >= 2 and B // best < 2:                    # keep >= 2 grid steps
        for tb in range(best, 0, -1):
            if B % tb == 0 and B // tb >= 2:
                best = tb
                break
    return best


def pos_embedder_forward(x: jnp.ndarray, pos: jnp.ndarray,
                         table: jnp.ndarray) -> jnp.ndarray:
    """x: (B, S, D) float dtype; pos: (B, S-1, 2) float;
    table: (201, D//2) f32 sinusoidal table (as in the PyTorch module)."""
    B, S, D = x.shape
    Bp, S_pos, two = pos.shape
    assert S == S_pos + 1 and two == 2 and Bp == B
    half = D // 2

    # ---- index prep in XLA: round (half-to-even, like torch.round), offset,
    # and sentinel-ize out-of-range indices so they select a ZERO embedding
    # instead of polluting the other table block. -------------------------------
    pos_i = jnp.round(pos).astype(jnp.int32)                               # (B, S-1, 2)
    in_range = (pos_i >= -MAX_POSITION_INDEX) & (pos_i <= MAX_POSITION_INDEX)
    idx0 = jnp.where(in_range[..., 0], pos_i[..., 0] + MAX_POSITION_INDEX, -1)
    idx1 = jnp.where(in_range[..., 1],
                     pos_i[..., 1] + MAX_POSITION_INDEX + TABLE_ROWS, -1)  # 2nd block
    idx = jnp.stack([idx0, idx1], axis=-1)                                 # (B, S-1, 2)
    idx = jnp.concatenate(
        [jnp.full((B, 1, 2), -1, jnp.int32), idx], axis=1)                 # (B, S, 2)

    # ---- fused block-diagonal table [[T, 0], [0, T]], rows padded to 512,
    # decomposed into bf16 planes: 1 plane for bf16 callers (output is bf16
    # anyway), 3 planes (bf16x3) for wider dtypes so f32 precision is preserved
    # while the matmul stays on the fast bf16 MXU path. -------------------------
    fused_f32 = jnp.zeros((N_FUSED, D), jnp.float32)
    fused_f32 = fused_f32.at[:TABLE_ROWS, :half].set(table)
    fused_f32 = fused_f32.at[TABLE_ROWS:2 * TABLE_ROWS, half:2 * half].set(table)
    # (odd D: trailing column stays zero, matching the torch.zeros((B,S,1)) pad)
    n_planes = 1 if x.dtype == jnp.bfloat16 else 3
    planes, resid = [], fused_f32
    for _ in range(n_planes):
        p = resid.astype(jnp.bfloat16)
        planes.append(p)
        resid = resid - p.astype(jnp.float32)
    fused = jnp.stack(planes, axis=0)                                      # (P, 512, D)

    budget = _vmem_budget_bytes()
    tb = _choose_tb(B, S, D, jnp.dtype(x.dtype).itemsize, n_planes, budget)

    return pl.pallas_call(
        _pos_embed_kernel,
        out_shape=jax.ShapeDtypeStruct((B, S, D), x.dtype),
        grid_spec=pltpu.PrefetchScalarGridSpec(
            num_scalar_prefetch=0,
            grid=(B // tb,),
            in_specs=[
                pl.BlockSpec((tb, S, 2), lambda b: (b, 0, 0)),
                pl.BlockSpec((tb, S, D), lambda b: (b, 0, 0)),
                # constant index_map -> DMA'd once; the dead second buffer is
                # accounted for in _choose_tb instead of risking Buffered(1).
                pl.BlockSpec((n_planes, N_FUSED, D), lambda b: (0, 0, 0)),
            ],
            out_specs=pl.BlockSpec((tb, S, D), lambda b: (b, 0, 0)),
        ),
        compiler_params=pltpu.CompilerParams(
            dimension_semantics=("parallel",),
            vmem_limit_bytes=budget),
    )(idx, x, fused)


def pos_embedder_reference(x, pos, table):
    """Pure-JAX reference mirroring the PyTorch forward (eval mode)."""
    pos_i = jnp.round(pos).astype(jnp.int32) + MAX_POSITION_INDEX
    B, S_pos, _ = pos_i.shape
    D = x.shape[-1]
    emb0 = table[pos_i[:, :, 0], :]
    emb1 = table[pos_i[:, :, 1], :]
    parts = [emb0, emb1]
    if D % 2 == 1:
        parts.append(jnp.zeros((B, S_pos, 1), jnp.float32))
    pe = jnp.concatenate(parts, axis=-1)
    pe = jnp.concatenate([jnp.zeros((B, 1, D), jnp.float32), pe], axis=1)
    return (x.astype(jnp.float32) + pe).astype(x.dtype)


if __name__ == "__main__":
    embed_dim = 128          # lane-dense output (multiple of 128)
    B, S = 4, 8              # S multiple of 8 (sublane-aligned); grid gets 2 steps
    S_pos = S - 1

    table = _build_pos_table(embed_dim)

    key = jax.random.PRNGKey(0)
    kx, kp = jax.random.split(key)
    x = jax.random.normal(kx, (B, S, embed_dim), dtype=jnp.float32)
    pos = jax.random.uniform(kp, (B, S_pos, 2), minval=-50.0, maxval=50.0,
                             dtype=jnp.float32)

    # float32 activations (3-plane bf16x3 table -> ~f32-accurate PE)
    out = jax.block_until_ready(pos_embedder_forward(x, pos, table))
    ref = pos_embedder_reference(x, pos, table)
    assert out.shape == (B, S, embed_dim) and out.dtype == x.dtype
    assert jnp.allclose(out, ref, atol=1e-5, rtol=1e-5), "f32 mismatch vs reference"

    # bfloat16 activations: dtype preserved end-to-end, single bf16 matmul
    x_bf16 = x.astype(jnp.bfloat16)
    out_bf16 = jax.block_until_ready(pos_embedder_forward(x_bf16, pos, table))
    ref_bf16 = pos_embedder_reference(x_bf16, pos, table)
    assert out_bf16.dtype == jnp.bfloat16
    assert jnp.allclose(out_bf16.astype(jnp.float32),
                        ref_bf16.astype(jnp.float32),
                        atol=2e-2, rtol=2e-2), "bf16 mismatch vs reference"

    print("KERNEL_OK")
</pallas_src>

<mosaic_0001>
module attributes {stable_mosaic.version = 11 : i64} {
  func.func @_pos_embed_kernel(%arg0: i32, %arg1: memref<2x8x2xi32, #tpu.memory_space<vmem>>, %arg2: memref<2x8x128xf32, #tpu.memory_space<vmem>>, %arg3: memref<3x512x128xbf16, #tpu.memory_space<vmem>>, %arg4: memref<2x8x128xf32, #tpu.memory_space<vmem>>) attributes {dimension_semantics = [#tpu.dimension_semantics<parallel>], iteration_bounds = array<i64: 2>, scalar_prefetch = 0 : i64, scratch_operands = 0 : i64, tpu.core_type = #tpu.core_type<tc>, window_params = [{transform_indices = @transform_0, window_bounds = array<i64: 2, 8, 2>}, {transform_indices = @transform_1, window_bounds = array<i64: 2, 8, 128>}, {pipeline_mode = #tpu.pipeline_mode<synchronous>, transform_indices = @transform_2, window_bounds = array<i64: 3, 512, 128>}, {transform_indices = @transform_3, window_bounds = array<i64: 2, 8, 128>}]} {
    %c0 = arith.constant 0 : index
    %c0_0 = arith.constant 0 : index
    %c0_1 = arith.constant 0 : index
    %0 = vector.load %arg1[%c0, %c0_0, %c0_1] : memref<2x8x2xi32, #tpu.memory_space<vmem>>, vector<2x8x2xi32>
    %1 = vector.shape_cast %0 : vector<2x8x2xi32> to vector<16x2xi32>
    %2 = tpu.iota {dimensions = array<i32: 1>} : vector<16x512xi32>
    %3 = vector.extract_strided_slice %1 {offsets = [0, 0], sizes = [16, 1], strides = [1, 1]} : vector<16x2xi32> to vector<16x1xi32>
    %4 = vector.broadcast %3 : vector<16x1xi32> to vector<16x512xi32>
    %5 = arith.cmpi eq, %2, %4 : vector<16x512xi32>
    %6 = vector.extract_strided_slice %1 {offsets = [0, 1], sizes = [16, 1], strides = [1, 1]} : vector<16x2xi32> to vector<16x1xi32>
    %7 = vector.broadcast %6 : vector<16x1xi32> to vector<16x512xi32>
    %8 = arith.cmpi eq, %2, %7 : vector<16x512xi32>
    %9 = arith.ori %5, %8 : vector<16x512xi1>
    %10 = arith.extui %9 : vector<16x512xi1> to vector<16x512xi32>
    %11 = arith.sitofp %10 : vector<16x512xi32> to vector<16x512xf32>
    %12 = arith.truncf %11 : vector<16x512xf32> to vector<16x512xbf16>
    %c0_2 = arith.constant 0 : index
    %c0_3 = arith.constant 0 : index
    %c0_4 = arith.constant 0 : index
    %13 = vector.load %arg3[%c0_2, %c0_3, %c0_4] : memref<3x512x128xbf16, #tpu.memory_space<vmem>>, vector<1x512x128xbf16>
    %14 = vector.shape_cast %13 : vector<1x512x128xbf16> to vector<512x128xbf16>
    %cst = arith.constant dense<0.000000e+00> : vector<16x128xf32>
    %15 = tpu.matmul %12, %14, %cst {dimension_numbers = #tpu.dot_dimension_numbers<[1], [0], [0], [1], [0, 0, 1, 1], [], []>} : vector<16x512xbf16>, vector<512x128xbf16>, vector<16x128xf32> -> vector<16x128xf32>
    %c1 = arith.constant 1 : index
    %c0_5 = arith.constant 0 : index
    %c0_6 = arith.constant 0 : index
    %16 = vector.load %arg3[%c1, %c0_5, %c0_6] : memref<3x512x128xbf16, #tpu.memory_space<vmem>>, vector<1x512x128xbf16>
    %17 = vector.shape_cast %16 : vector<1x512x128xbf16> to vector<512x128xbf16>
    %cst_7 = arith.constant dense<0.000000e+00> : vector<16x128xf32>
    %18 = tpu.matmul %12, %17, %cst_7 {dimension_numbers = #tpu.dot_dimension_numbers<[1], [0], [0], [1], [0, 0, 1, 1], [], []>} : vector<16x512xbf16>, vector<512x128xbf16>, vector<16x128xf32> -> vector<16x128xf32>
    %19 = arith.addf %15, %18 : vector<16x128xf32>
    %c2 = arith.constant 2 : index
    %c0_8 = arith.constant 0 : index
    %c0_9 = arith.constant 0 : index
    %20 = vector.load %arg3[%c2, %c0_8, %c0_9] : memref<3x512x128xbf16, #tpu.memory_space<vmem>>, vector<1x512x128xbf16>
    %21 = vector.shape_cast %20 : vector<1x512x128xbf16> to vector<512x128xbf16>
    %cst_10 = arith.constant dense<0.000000e+00> : vector<16x128xf32>
    %22 = tpu.matmul %12, %21, %cst_10 {dimension_numbers = #tpu.dot_dimension_numbers<[1], [0], [0], [1], [0, 0, 1, 1], [], []>} : vector<16x512xbf16>, vector<512x128xbf16>, vector<16x128xf32> -> vector<16x128xf32>
    %23 = arith.addf %19, %22 : vector<16x128xf32>
    %24 = vector.shape_cast %23 : vector<16x128xf32> to vector<2x8x128xf32>
    %c0_11 = arith.constant 0 : index
    %c0_12 = arith.constant 0 : index
    %c0_13 = arith.constant 0 : index
    %25 = vector.load %arg2[%c0_11, %c0_12, %c0_13] : memref<2x8x128xf32, #tpu.memory_space<vmem>>, vector<2x8x128xf32>
    %26 = arith.addf %25, %24 : vector<2x8x128xf32>
    %c0_14 = arith.constant 0 : index
    %c0_15 = arith.constant 0 : index
    %c0_16 = arith.constant 0 : index
    %27 = vector.load %arg4[%c0_14, %c0_15, %c0_16] : memref<2x8x128xf32, #tpu.memory_space<vmem>>, vector<2x8x128xf32>
    tpu.vector_store %arg4[%c0_14, %c0_15, %c0_16], %26 {strides = array<i32>} : memref<2x8x128xf32, #tpu.memory_space<vmem>>, vector<2x8x128xf32>,
    return
  }
  func.func @transform_0(%arg0: i32) -> (i32, i32, i32) {
    %c0_i32 = arith.constant 0 : i32
    %c0_i32_0 = arith.constant 0 : i32
    %c0_i32_1 = arith.constant 0 : i32
    return %arg0, %c0_i32, %c0_i32_0 : i32, i32, i32
  }
  func.func @transform_1(%arg0: i32) -> (i32, i32, i32) {
    %c0_i32 = arith.constant 0 : i32
    %c0_i32_0 = arith.constant 0 : i32
    %c0_i32_1 = arith.constant 0 : i32
    return %arg0, %c0_i32, %c0_i32_0 : i32, i32, i32
  }
  func.func @transform_2(%arg0: i32) -> (i32, i32, i32) {
    %c0_i32 = arith.constant 0 : i32
    %c0_i32_0 = arith.constant 0 : i32
    %c0_i32_1 = arith.constant 0 : i32
    %c0_i32_2 = arith.constant 0 : i32
    return %c0_i32, %c0_i32_0, %c0_i32_1 : i32, i32, i32
  }
  func.func @transform_3(%arg0: i32) -> (i32, i32, i32) {
    %c0_i32 = arith.constant 0 : i32
    %c0_i32_0 = arith.constant 0 : i32
    %c0_i32_1 = arith.constant 0 : i32
    return %arg0, %c0_i32, %c0_i32_0 : i32, i32, i32
  }
}

</mosaic_0001>

<llo_original>
// kernel: tpu_custom_call.1
$region0: #{tpu_custom_call.1}
  #allocation0 [shape = 'u32[]', space=smem, size = 0x4, offset = 0x4, fixed_abs, tag = 'smem constant byte address 0x4 - core index']
  #allocation1 [shape = 'u32[144,128]{1,0:T(1,128)}', space=vmem, size = 0x12000, scoped, tag = 'internal scratch']
  %s0 = inlined_call_operand.vmem [shape: s32[4,8,2], index: 0, kind: input, shape index: {}]
  %s1 = inlined_call_operand.vmem [shape: f32[4,8,128], index: 1, kind: input, shape index: {}]
  %s2 = inlined_call_operand.hbm [shape: bf16[3,512,128], index: 2, kind: input, shape index: {}]
  %s3 = inlined_call_operand.hbm [shape: f32[4,8,128], index: 3, kind: output, shape index: {}]
  %s4 = sld [smem:[#allocation0]]
  $region49: #{tpu_custom_call.1} parent=0
    _
  %s6 = ssub.s32 1, %s4
  %s7 = scalar_select 0, %s6, %s4
  $region1: #{tpu_custom_call.1} parent=0
    #allocation2 [shape = 'u8[393216]{0}', space=vmem, size = 0x60000, scoped, tag = 'input window, operand 2, single buffered']
    #allocation3 [shape = 's32[2]{0}', space=sflag, size = 0x8, scoped, tag = 'scoped memory for tpu_custom_call.1']
    #allocation4 [shape = 's32[2]{0}', space=sflag, size = 0x8, scoped, tag = 'scoped memory for tpu_custom_call.1']
    #allocation5 [shape = 'u8[16384]{0}', space=vmem, size = 0x4000, scoped, tag = 'output window, operand 0']
    %8 = vsyncpa [#allocation3], 0
    %9 = vsyncpa [#allocation4], 0
    %s10 = scalar_lea.sflag [#allocation4], 1
    %11 = vsyncpa %s10, 0
    loop: start=0, step=1, limit=4
    $region2: #{tpu_custom_call.1} parent=1 // loop_pre_header
      _
    $region3: #{tpu_custom_call.1} parent=1 // loop_header
      %s13 = sphi 0, %s17
      %p14 = scmp.ge.s32.totalorder %s13, 4
      %s23 = sphi 0, %s25
      %s26 = sphi 0, %s23
      %s27 = sphi 0, %s26
      %s43 = sphi 0, %s27
      %s49 = sphi 0, %s51
      %s52 = sphi 0, %s49
      %s53 = sphi 0, %s52
      %s69 = sphi 0, %s53
      %s73 = sphi 0, %s73
      %s75 = sphi 0, %s73
      %s76 = sphi 0, %s75
      %s90 = sphi 0, %s76
      %s96 = sphi 0, %s98
      %s99 = sphi 0, %s96
      %s100 = sphi 0, %s99
      %s116 = sphi 0, %s100
    $region4: #{tpu_custom_call.1} parent=1 // loop_header_branch
      %16 = sbr.rel (%p14) target = $region8
    $region5: #{tpu_custom_call.1} parent=1 // loop_body
      %s18 = ssub.s32 %s13, 1
      %s19 = ssub.s32 %s13, 2
      %s20 = sadd.s32 %s13, 1
      %s21 = ssub.s32 %s13, %s20
      %p22 = scmp.eq.s32.totalorder %s21, 0
      %s24 = sadd.s32 %s23, 1
      %s25 = scalar_select %p22, %s23, %s24
      %p28 = pneg %p22
      %p29 = scmp.eq.s32.totalorder %s13, 1
      %p30 = por %p28, %p29
      %p31 = scmp.ne.s32.totalorder %s23, %s26
      %p32 = scmp.eq.s32.totalorder %s13, 0
      %p33 = por %p31, %p32
      %p34 = scmp.ne.s32.totalorder %s23, %s26
      %p35 = scmp.eq.s32.totalorder %s18, 1
      %p36 = por %p34, %p35
      %p37 = scmp.ne.s32.totalorder %s26, %s27
      %p38 = scmp.eq.s32.totalorder %s18, 0
      %p39 = por %p37, %p38
      %p40 = scmp.ne.s32.totalorder %s26, %s27
      %p41 = scmp.eq.s32.totalorder %s19, 1
      %p42 = por %p40, %p41
      %p44 = scmp.ne.s32.totalorder %s27, %s43
      %p45 = scmp.eq.s32.totalorder %s19, 0
      %p46 = por %p44, %p45
      %s47 = ssub.s32 %s13, %s20
      %p48 = scmp.eq.s32.totalorder %s47, 0
      %s50 = sadd.s32 %s49, 1
      %s51 = scalar_select %p48, %s49, %s50
      %p54 = pneg %p48
      %p55 = scmp.eq.s32.totalorder %s13, 1
      %p56 = por %p54, %p55
      %p57 = scmp.ne.s32.totalorder %s49, %s52
      %p58 = scmp.eq.s32.totalorder %s13, 0
      %p59 = por %p57, %p58
      %p60 = scmp.ne.s32.totalorder %s49, %s52
      %p61 = scmp.eq.s32.totalorder %s18, 1
      %p62 = por %p60, %p61
      %p63 = scmp.ne.s32.totalorder %s52, %s53
      %p64 = scmp.eq.s32.totalorder %s18, 0
      %p65 = por %p63, %p64
      %p66 = scmp.ne.s32.totalorder %s52, %s53
      %p67 = scmp.eq.s32.totalorder %s19, 1
      %p68 = por %p66, %p67
      %p70 = scmp.ne.s32.totalorder %s53, %s69
      %p71 = scmp.eq.s32.totalorder %s19, 0
      %p72 = por %p70, %p71
      %s74 = sadd.s32 %s73, 1
      %p77 = scmp.eq.s32.totalorder %s13, 1
      %p78 = scmp.ne.s32.totalorder %s73, %s75
      %p79 = scmp.eq.s32.totalorder %s13, 0
      %p80 = por %p78, %p79
      %p81 = scmp.ne.s32.totalorder %s73, %s75
      %p82 = scmp.eq.s32.totalorder %s18, 1
      %p83 = por %p81, %p82
      %p84 = scmp.ne.s32.totalorder %s75, %s76
      %p85 = scmp.eq.s32.totalorder %s18, 0
      %p86 = por %p84, %p85
      %p87 = scmp.ne.s32.totalorder %s75, %s76
      %p88 = scmp.eq.s32.totalorder %s19, 1
      %p89 = por %p87, %p88
      %p91 = scmp.ne.s32.totalorder %s76, %s90
      %p92 = scmp.eq.s32.totalorder %s19, 0
      %p93 = por %p91, %p92
      %s94 = ssub.s32 %s13, %s20
      %p95 = scmp.eq.s32.totalorder %s94, 0
      %s97 = sadd.s32 %s96, 1
      %s98 = scalar_select %p95, %s96, %s97
      %p101 = pneg %p95
      %p102 = scmp.eq.s32.totalorder %s13, 1
      %p103 = por %p101, %p102
      %p104 = scmp.ne.s32.totalorder %s96, %s99
      %p105 = scmp.eq.s32.totalorder %s13, 0
      %p106 = por %p104, %p105
      %p107 = scmp.ne.s32.totalorder %s96, %s99
      %p108 = scmp.eq.s32.totalorder %s18, 1
      %p109 = por %p107, %p108
      %p110 = scmp.ne.s32.totalorder %s99, %s100
      %p111 = scmp.eq.s32.totalorder %s18, 0
      %p112 = por %p110, %p111
      %p113 = scmp.ne.s32.totalorder %s99, %s100
      %p114 = scmp.eq.s32.totalorder %s19, 1
      %p115 = por %p113, %p114
      %p117 = scmp.ne.s32.totalorder %s100, %s116
      %p118 = scmp.eq.s32.totalorder %s19, 0
      %p119 = por %p117, %p118
      %p120 = scmp.le.s32.totalorder 1, %s13
      %p121 = scmp.lt.s32.totalorder %s13, 3
      %p122 = pnand %p120, %p121
      %p123 = pneg %p122
      // Predicated region
      $region9: #{tpu_custom_call.1} parent=5 // pred_check
        _
      $region10: #{tpu_custom_call.1} parent=5 // pred_check_branch
        %125 = sbr.rel (%p122) target = $region12
      $region11: #{tpu_custom_call.1} parent=5 // pred_region
        %s126 = ssub.s32 %s13, 1
        // Predicated region
        $region13: #{tpu_custom_call.1} parent=11 // pred_check
          %p127 = pneg %p86
        $region14: #{tpu_custom_call.1} parent=11 // pred_check_branch
          %129 = sbr.rel (%p127) target = $region16
        $region15: #{tpu_custom_call.1} parent=11 // pred_region
          %s131 = ssub.s32 12288, 12288
          %132 = vsyncadd [#allocation3], %s131
          %s133 = sshll.u32 [#allocation2], 4
          %s134 = int_to_ptr.vmem [resolvable:$true] %s133
          %139 = dma.hbm_to_vmem [thread:$0]  %s2, 12288, %s134, [#allocation3], 64, 64, 4
        $region16: #{tpu_custom_call.1} parent=11 // pred_fallthru
          _
      $region12: #{tpu_custom_call.1} parent=5 // pred_fallthru
        _
      %p140 = scmp.lt.s32.totalorder %s13, 2
      // Predicated region
      $region17: #{tpu_custom_call.1} parent=5 // pred_check
        %p141 = pneg %p140
      $region18: #{tpu_custom_call.1} parent=5 // pred_check_branch
        %143 = sbr.rel (%p141) target = $region20
      $region19: #{tpu_custom_call.1} parent=5 // pred_region
        // Predicated region
        $region21: #{tpu_custom_call.1} parent=19 // pred_check
          %p144 = pneg %p33
        $region22: #{tpu_custom_call.1} parent=19 // pred_check_branch
          %146 = sbr.rel (%p144) target = $region24
        $region23: #{tpu_custom_call.1} parent=19 // pred_region
          %s147 = smul.u32 2, %s13
          %p148 = scmp.lt.s32.totalorder %s147, 3
          %s149 = scalar_select %p148, %s147, 3
          %s150 = smul.addr %s149, 8
          %s151 = scalar_lea.vmem %s0, %s150
          %s152 = smul.u32 2, %s13
        $region24: #{tpu_custom_call.1} parent=19 // pred_fallthru
          _
        // Predicated region
        $region25: #{tpu_custom_call.1} parent=19 // pred_check
          %p153 = pneg %p59
        $region26: #{tpu_custom_call.1} parent=19 // pred_check_branch
          %155 = sbr.rel (%p153) target = $region28
        $region27: #{tpu_custom_call.1} parent=19 // pred_region
          %s156 = smul.u32 2, %s13
          %p157 = scmp.lt.s32.totalorder %s156, 3
          %s158 = scalar_select %p157, %s156, 3
          %s159 = smul.addr %s158, 8
          %s160 = scalar_lea.vmem %s1, %s159
          %s161 = smul.u32 2, %s13
        $region28: #{tpu_custom_call.1} parent=19 // pred_fallthru
          _
      $region20: #{tpu_custom_call.1} parent=5 // pred_fallthru
        _
      %p162 = scmp.le.s32.totalorder 1, %s13
      %p163 = scmp.lt.s32.totalorder %s13, 3
      %p164 = pnand %p162, %p163
      %p165 = pneg %p164
      // Predicated region
      $region29: #{tpu_custom_call.1} parent=5 // pred_check
        _
      $region30: #{tpu_custom_call.1} parent=5 // pred_check_branch
        %167 = sbr.rel (%p164) target = $region32
      $region31: #{tpu_custom_call.1} parent=5 // pred_region
        %s168 = ssub.s32 %s13, 1
        // Predicated region
        $region33: #{tpu_custom_call.1} parent=31 // pred_check
          %p169 = pneg %p86
        $region34: #{tpu_custom_call.1} parent=31 // pred_check_branch
          %171 = sbr.rel (%p169) target = $region36
        $region35: #{tpu_custom_call.1} parent=31 // pred_region
          %172 = dma.done [#allocation3], 12288
        $region36: #{tpu_custom_call.1} parent=31 // pred_fallthru
          _
        %s173 = smul.u32 2, %s18
        %p174 = scmp.lt.s32.totalorder %s173, 3
        %s175 = scalar_select %p174, %s173, 3
        %s176 = smul.addr %s175, 8
        %s177 = scalar_lea.vmem %s0, %s176
        %p178 = pneg %p39
        %p179 = pneg %p36
        %s180 = smul.u32 2, %s18
        %p181 = scmp.lt.s32.totalorder %s180, 3
        %s182 = scalar_select %p181, %s180, 3
        %s183 = smul.addr %s182, 8
        %s184 = scalar_lea.vmem %s1, %s183
        %p185 = pneg %p65
        %p186 = pneg %p62
        %p187 = pneg %p86
        %p188 = pneg %p83
        %p189 = pneg %p112
        %p190 = pneg %p109
        %s191 = sand.u32 %s99, 1
        %s192 = scalar_lea.sflag [#allocation4], %s191
        %s193 = sand.u32 %s99, 1
        %s194 = smul.addr %s193, 16
        %s195 = scalar_lea.vmem [#allocation5], %s194
        %s196 = smul.u32 2, %s18
        %p197 = scmp.lt.s32.totalorder %s196, 3
        %s198 = scalar_select %p197, %s196, 3
        %s199 = smul.addr %s198, 8
        %s200 = scalar_lea.vmem %s0, %s199
        %s201 = smul.u32 2, %s18
        %s202 = smul.u32 2, %s18
        %p203 = scmp.lt.s32.totalorder %s202, 3
        %s204 = scalar_select %p203, %s202, 3
        %s205 = smul.addr %s204, 8
        %s206 = scalar_lea.vmem %s1, %s205
        %s207 = smul.u32 2, %s18
        %s208 = smul.u32 2, %s18
        %v210 = vld [vmem:[%s200] sm:$0xff]
        %v211 = vld [vmem:[%s200 + $0x8] sm:$0xff]
        %v212 = vlaneseq
        %v213 = vand.u32 %v212, 127
        %v214 = vadd.s32 %v213, 128
        %v215 = vadd.s32 %v213, 256
        %v216 = vadd.s32 %v213, 384
        %217 = vset.pattern.permute.xlu0 0
        %218 = vperm.xlu0 %217, %v210
        %v219 = vpop.permute.xlu0 %218
        %220 = vset.pattern.permute.xlu0 0
        %221 = vperm.xlu0 %220, %v211
        %v222 = vpop.permute.xlu0 %221
        %vm223 = vcmp.eq.s32.totalorder %v213, %v219
        %vm224 = vcmp.eq.s32.totalorder %v214, %v219
        %vm225 = vcmp.eq.s32.totalorder %v215, %v219
        %vm226 = vcmp.eq.s32.totalorder %v216, %v219
        %vm227 = vcmp.eq.s32.totalorder %v213, %v222
        %vm228 = vcmp.eq.s32.totalorder %v214, %v222
        %vm229 = vcmp.eq.s32.totalorder %v215, %v222
        %vm230 = vcmp.eq.s32.totalorder %v216, %v222
        %231 = vset.pattern.permute.xlu0 1
        %232 = vperm.xlu0 %231, %v210
        %v233 = vpop.permute.xlu0 %232
        %234 = vset.pattern.permute.xlu0 1
        %235 = vperm.xlu0 %234, %v211
        %v236 = vpop.permute.xlu0 %235
        %vm237 = vcmp.eq.s32.totalorder %v213, %v233
        %vm238 = vcmp.eq.s32.totalorder %v214, %v233
        %vm239 = vcmp.eq.s32.totalorder %v215, %v233
        %vm240 = vcmp.eq.s32.totalorder %v216, %v233
        %vm241 = vcmp.eq.s32.totalorder %v213, %v236
        %vm242 = vcmp.eq.s32.totalorder %v214, %v236
        %vm243 = vcmp.eq.s32.totalorder %v215, %v236
        %vm244 = vcmp.eq.s32.totalorder %v216, %v236
        %vm245 = vmor %vm223, %vm237
        %vm246 = vmor %vm224, %vm238
        %vm247 = vmor %vm225, %vm239
        %vm248 = vmor %vm226, %vm240
        %vm249 = vmor %vm227, %vm241
        %vm250 = vmor %vm228, %vm242
        %vm251 = vmor %vm229, %vm243
        %vm252 = vmor %vm230, %vm244
        %v253 = vsel %vm245, 1, 0
        %v254 = vsel %vm246, 1, 0
        %v255 = vsel %vm247, 1, 0
        %v256 = vsel %vm248, 1, 0
        %v257 = vsel %vm249, 1, 0
        %v258 = vsel %vm250, 1, 0
        %v259 = vsel %vm251, 1, 0
        %v260 = vsel %vm252, 1, 0
        %v261 = vcvt.s32.f32 %v253
        %v262 = vcvt.s32.f32 %v254
        %v263 = vcvt.s32.f32 %v255
        %v264 = vcvt.s32.f32 %v256
        %v265 = vcvt.s32.f32 %v257
        %v266 = vcvt.s32.f32 %v258
        %v267 = vcvt.s32.f32 %v259
        %v268 = vcvt.s32.f32 %v260
        %v269 = vpack.c.bf16 %v265, %v261
        %v270 = vpack.c.bf16 %v266, %v262
        %v271 = vpack.c.bf16 %v267, %v263
        %v272 = vpack.c.bf16 %v268, %v264
        %v273 = vld [vmem:[#allocation2] sm:$0xf]
        %v274 = vld [vmem:[#allocation2 + $0x4] sm:$0xf]
        %v275 = vld [vmem:[#allocation2 + $0x8] sm:$0xf]
        %v276 = vld [vmem:[#allocation2 + $0xc] sm:$0xf]
        %v277 = vld [vmem:[#allocation2 + $0x10] sm:$0xf]
        %v278 = vld [vmem:[#allocation2 + $0x14] sm:$0xf]
        %v279 = vld [vmem:[#allocation2 + $0x18] sm:$0xf]
        %v280 = vld [vmem:[#allocation2 + $0x1c] sm:$0xf]
        %v281 = vld [vmem:[#allocation2 + $0x20] sm:$0xf]
        %v282 = vld [vmem:[#allocation2 + $0x24] sm:$0xf]
        %v283 = vld [vmem:[#allocation2 + $0x28] sm:$0xf]
        %v284 = vld [vmem:[#allocation2 + $0x2c] sm:$0xf]
        %v285 = vld [vmem:[#allocation2 + $0x30] sm:$0xf]
        %v286 = vld [vmem:[#allocation2 + $0x34] sm:$0xf]
        %v287 = vld [vmem:[#allocation2 + $0x38] sm:$0xf]
        %v288 = vld [vmem:[#allocation2 + $0x3c] sm:$0xf]
        %v289 = vld [vmem:[#allocation2 + $0x40] sm:$0xf]
        %v290 = vld [vmem:[#allocation2 + $0x44] sm:$0xf]
        %v291 = vld [vmem:[#allocation2 + $0x48] sm:$0xf]
        %v292 = vld [vmem:[#allocation2 + $0x4c] sm:$0xf]
        %v293 = vld [vmem:[#allocation2 + $0x50] sm:$0xf]
        %v294 = vld [vmem:[#allocation2 + $0x54] sm:$0xf]
        %v295 = vld [vmem:[#allocation2 + $0x58] sm:$0xf]
        %v296 = vld [vmem:[#allocation2 + $0x5c] sm:$0xf]
        %v297 = vld [vmem:[#allocation2 + $0x60] sm:$0xf]
        %v298 = vld [vmem:[#allocation2 + $0x64] sm:$0xf]
        %v299 = vld [vmem:[#allocation2 + $0x68] sm:$0xf]
        %v300 = vld [vmem:[#allocation2 + $0x6c] sm:$0xf]
        %v301 = vld [vmem:[#allocation2 + $0x70] sm:$0xf]
        %v302 = vld [vmem:[#allocation2 + $0x74] sm:$0xf]
        %v303 = vld [vmem:[#allocation2 + $0x78] sm:$0xf]
        %v304 = vld [vmem:[#allocation2 + $0x7c] sm:$0xf]
        %v305 = vld [vmem:[#allocation2 + $0x80] sm:$0xf]
        %v306 = vld [vmem:[#allocation2 + $0x84] sm:$0xf]
        %v307 = vld [vmem:[#allocation2 + $0x88] sm:$0xf]
        %v308 = vld [vmem:[#allocation2 + $0x8c] sm:$0xf]
        %v309 = vld [vmem:[#allocation2 + $0x90] sm:$0xf]
        %v310 = vld [vmem:[#allocation2 + $0x94] sm:$0xf]
        %v311 = vld [vmem:[#allocation2 + $0x98] sm:$0xf]
        %v312 = vld [vmem:[#allocation2 + $0x9c] sm:$0xf]
        %v313 = vld [vmem:[#allocation2 + $0xa0] sm:$0xf]
        %v314 = vld [vmem:[#allocation2 + $0xa4] sm:$0xf]
        %v315 = vld [vmem:[#allocation2 + $0xa8] sm:$0xf]
        %v316 = vld [vmem:[#allocation2 + $0xac] sm:$0xf]
        %v317 = vld [vmem:[#allocation2 + $0xb0] sm:$0xf]
        %v318 = vld [vmem:[#allocation2 + $0xb4] sm:$0xf]
        %v319 = vld [vmem:[#allocation2 + $0xb8] sm:$0xf]
        %v320 = vld [vmem:[#allocation2 + $0xbc] sm:$0xf]
        %v321 = vld [vmem:[#allocation2 + $0xc0] sm:$0xf]
        %v322 = vld [vmem:[#allocation2 + $0xc4] sm:$0xf]
        %v323 = vld [vmem:[#allocation2 + $0xc8] sm:$0xf]
        %v324 = vld [vmem:[#allocation2 + $0xcc] sm:$0xf]
        %v325 = vld [vmem:[#allocation2 + $0xd0] sm:$0xf]
        %v326 = vld [vmem:[#allocation2 + $0xd4] sm:$0xf]
        %v327 = vld [vmem:[#allocation2 + $0xd8] sm:$0xf]
        %v328 = vld [vmem:[#allocation2 + $0xdc] sm:$0xf]
        %v329 = vld [vmem:[#allocation2 + $0xe0] sm:$0xf]
        %v330 = vld [vmem:[#allocation2 + $0xe4] sm:$0xf]
        %v331 = vld [vmem:[#allocation2 + $0xe8] sm:$0xf]
        %v332 = vld [vmem:[#allocation2 + $0xec] sm:$0xf]
        %v333 = vld [vmem:[#allocation2 + $0xf0] sm:$0xf]
        %v334 = vld [vmem:[#allocation2 + $0xf4] sm:$0xf]
        %v335 = vld [vmem:[#allocation2 + $0xf8] sm:$0xf]
        %v336 = vld [vmem:[#allocation2 + $0xfc] sm:$0xf]
        %s337 = scalar_lea.vmem [#allocation2], 256
        %v338 = vld [vmem:[%s337] sm:$0xf]
        %v339 = vld [vmem:[%s337 + $0x4] sm:$0xf]
        %v340 = vld [vmem:[%s337 + $0x8] sm:$0xf]
        %v341 = vld [vmem:[%s337 + $0xc] sm:$0xf]
        %v342 = vld [vmem:[%s337 + $0x10] sm:$0xf]
        %v343 = vld [vmem:[%s337 + $0x14] sm:$0xf]
        %v344 = vld [vmem:[%s337 + $0x18] sm:$0xf]
        %v345 = vld [vmem:[%s337 + $0x1c] sm:$0xf]
        %v346 = vld [vmem:[%s337 + $0x20] sm:$0xf]
        %v347 = vld [vmem:[%s337 + $0x24] sm:$0xf]
        %v348 = vld [vmem:[%s337 + $0x28] sm:$0xf]
        %v349 = vld [vmem:[%s337 + $0x2c] sm:$0xf]
        %v350 = vld [vmem:[%s337 + $0x30] sm:$0xf]
        %v351 = vld [vmem:[%s337 + $0x34] sm:$0xf]
        %v352 = vld [vmem:[%s337 + $0x38] sm:$0xf]
        %v353 = vld [vmem:[%s337 + $0x3c] sm:$0xf]
        %v354 = vld [vmem:[%s337 + $0x40] sm:$0xf]
        %v355 = vld [vmem:[%s337 + $0x44] sm:$0xf]
        %v356 = vld [vmem:[%s337 + $0x48] sm:$0xf]
        %v357 = vld [vmem:[%s337 + $0x4c] sm:$0xf]
        %v358 = vld [vmem:[%s337 + $0x50] sm:$0xf]
        %v359 = vld [vmem:[%s337 + $0x54] sm:$0xf]
        %v360 = vld [vmem:[%s337 + $0x58] sm:$0xf]
        %v361 = vld [vmem:[%s337 + $0x5c] sm:$0xf]
        %v362 = vld [vmem:[%s337 + $0x60] sm:$0xf]
        %v363 = vld [vmem:[%s337 + $0x64] sm:$0xf]
        %v364 = vld [vmem:[%s337 + $0x68] sm:$0xf]
        %v365 = vld [vmem:[%s337 + $0x6c] sm:$0xf]
        %v366 = vld [vmem:[%s337 + $0x70] sm:$0xf]
        %v367 = vld [vmem:[%s337 + $0x74] sm:$0xf]
        %v368 = vld [vmem:[%s337 + $0x78] sm:$0xf]
        %v369 = vld [vmem:[%s337 + $0x7c] sm:$0xf]
        %v370 = vld [vmem:[%s337 + $0x80] sm:$0xf]
        %v371 = vld [vmem:[%s337 + $0x84] sm:$0xf]
        %v372 = vld [vmem:[%s337 + $0x88] sm:$0xf]
        %v373 = vld [vmem:[%s337 + $0x8c] sm:$0xf]
        %v374 = vld [vmem:[%s337 + $0x90] sm:$0xf]
        %v375 = vld [vmem:[%s337 + $0x94] sm:$0xf]
        %v376 = vld [vmem:[%s337 + $0x98] sm:$0xf]
        %v377 = vld [vmem:[%s337 + $0x9c] sm:$0xf]
        %v378 = vld [vmem:[%s337 + $0xa0] sm:$0xf]
        %v379 = vld [vmem:[%s337 + $0xa4] sm:$0xf]
        %v380 = vld [vmem:[%s337 + $0xa8] sm:$0xf]
        %v381 = vld [vmem:[%s337 + $0xac] sm:$0xf]
        %v382 = vld [vmem:[%s337 + $0xb0] sm:$0xf]
        %v383 = vld [vmem:[%s337 + $0xb4] sm:$0xf]
        %v384 = vld [vmem:[%s337 + $0xb8] sm:$0xf]
        %v385 = vld [vmem:[%s337 + $0xbc] sm:$0xf]
        %v386 = vld [vmem:[%s337 + $0xc0] sm:$0xf]
        %v387 = vld [vmem:[%s337 + $0xc4] sm:$0xf]
        %v388 = vld [vmem:[%s337 + $0xc8] sm:$0xf]
        %v389 = vld [vmem:[%s337 + $0xcc] sm:$0xf]
        %v390 = vld [vmem:[%s337 + $0xd0] sm:$0xf]
        %v391 = vld [vmem:[%s337 + $0xd4] sm:$0xf]
        %v392 = vld [vmem:[%s337 + $0xd8] sm:$0xf]
        %v393 = vld [vmem:[%s337 + $0xdc] sm:$0xf]
        %v394 = vld [vmem:[%s337 + $0xe0] sm:$0xf]
        %v395 = vld [vmem:[%s337 + $0xe4] sm:$0xf]
        %v396 = vld [vmem:[%s337 + $0xe8] sm:$0xf]
        %v397 = vld [vmem:[%s337 + $0xec] sm:$0xf]
        %v398 = vld [vmem:[%s337 + $0xf0] sm:$0xf]
        %v399 = vld [vmem:[%s337 + $0xf4] sm:$0xf]
        %v400 = vld [vmem:[%s337 + $0xf8] sm:$0xf]
        %v401 = vld [vmem:[%s337 + $0xfc] sm:$0xf]
        %v466 = vunpack.c.l.b16 %v338
        %v467 = vunpack.c.l.b16 %v339
        %v468 = vunpack.c.l.b16 %v340
        %v469 = vunpack.c.l.b16 %v341
        %v470 = vunpack.c.l.b16 %v342
        %v471 = vunpack.c.l.b16 %v343
        %v472 = vunpack.c.l.b16 %v344
        %v473 = vunpack.c.l.b16 %v345
        %v474 = vunpack.c.l.b16 %v346
        %v475 = vunpack.c.l.b16 %v347
        %v476 = vunpack.c.l.b16 %v348
        %v477 = vunpack.c.l.b16 %v349
        %v478 = vunpack.c.l.b16 %v350
        %v479 = vunpack.c.l.b16 %v351
        %v480 = vunpack.c.l.b16 %v352
        %v481 = vunpack.c.l.b16 %v353
        %v482 = vunpack.c.l.b16 %v354
        %v483 = vunpack.c.l.b16 %v355
        %v484 = vunpack.c.l.b16 %v356
        %v485 = vunpack.c.l.b16 %v357
        %v486 = vunpack.c.l.b16 %v358
        %v487 = vunpack.c.l.b16 %v359
        %v488 = vunpack.c.l.b16 %v360
        %v489 = vunpack.c.l.b16 %v361
        %v490 = vunpack.c.l.b16 %v362
        %v491 = vunpack.c.l.b16 %v363
        %v492 = vunpack.c.l.b16 %v364
        %v493 = vunpack.c.l.b16 %v365
        %v494 = vunpack.c.l.b16 %v366
        %v495 = vunpack.c.l.b16 %v367
        %v496 = vunpack.c.l.b16 %v368
        %v497 = vunpack.c.l.b16 %v369
        %v498 = vunpack.c.l.b16 %v370
        %v499 = vunpack.c.l.b16 %v371
        %v500 = vunpack.c.l.b16 %v372
        %v501 = vunpack.c.l.b16 %v373
        %v502 = vunpack.c.l.b16 %v374
        %v503 = vunpack.c.l.b16 %v375
        %v504 = vunpack.c.l.b16 %v376
        %v505 = vunpack.c.l.b16 %v377
        %v506 = vunpack.c.l.b16 %v378
        %v507 = vunpack.c.l.b16 %v379
        %v508 = vunpack.c.l.b16 %v380
        %v509 = vunpack.c.l.b16 %v381
        %v510 = vunpack.c.l.b16 %v382
        %v511 = vunpack.c.l.b16 %v383
        %v512 = vunpack.c.l.b16 %v384
        %v513 = vunpack.c.l.b16 %v385
        %v514 = vunpack.c.l.b16 %v386
        %v515 = vunpack.c.l.b16 %v387
        %v516 = vunpack.c.l.b16 %v388
        %v517 = vunpack.c.l.b16 %v389
        %v518 = vunpack.c.l.b16 %v390
        %v519 = vunpack.c.l.b16 %v391
        %v520 = vunpack.c.l.b16 %v392
        %v521 = vunpack.c.l.b16 %v393
        %v522 = vunpack.c.l.b16 %v394
        %v523 = vunpack.c.l.b16 %v395
        %v524 = vunpack.c.l.b16 %v396
        %v525 = vunpack.c.l.b16 %v397
        %v526 = vunpack.c.l.b16 %v398
        %v527 = vunpack.c.l.b16 %v399
        %v528 = vunpack.c.l.b16 %v400
        %v529 = vunpack.c.l.b16 %v401
        %v530 = vpack.c.b16 %v467, %v466
        %v531 = vpack.c.b16 %v469, %v468
        %v532 = vpack.c.b16 %v471, %v470
        %v533 = vpack.c.b16 %v473, %v472
        %v534 = vpack.c.b16 %v475, %v474
        %v535 = vpack.c.b16 %v477, %v476
        %v536 = vpack.c.b16 %v479, %v478
        %v537 = vpack.c.b16 %v481, %v480
        %v538 = vpack.c.b16 %v483, %v482
        %v539 = vpack.c.b16 %v485, %v484
        %v540 = vpack.c.b16 %v487, %v486
        %v541 = vpack.c.b16 %v489, %v488
        %v542 = vpack.c.b16 %v491, %v490
        %v543 = vpack.c.b16 %v493, %v492
        %v544 = vpack.c.b16 %v495, %v494
        %v545 = vpack.c.b16 %v497, %v496
        %v546 = vpack.c.b16 %v499, %v498
        %v547 = vpack.c.b16 %v501, %v500
        %v548 = vpack.c.b16 %v503, %v502
        %v549 = vpack.c.b16 %v505, %v504
        %v550 = vpack.c.b16 %v507, %v506
        %v551 = vpack.c.b16 %v509, %v508
        %v552 = vpack.c.b16 %v511, %v510
        %v553 = vpack.c.b16 %v513, %v512
        %v554 = vpack.c.b16 %v515, %v514
        %v555 = vpack.c.b16 %v517, %v516
        %v556 = vpack.c.b16 %v519, %v518
        %v557 = vpack.c.b16 %v521, %v520
        %v558 = vpack.c.b16 %v523, %v522
        %v559 = vpack.c.b16 %v525, %v524
        %v560 = vpack.c.b16 %v527, %v526
        %v561 = vpack.c.b16 %v529, %v528
        %594 = vmatprep.subr.bf16.mxu0 0
        %595 = vmatpush1.bf16.msra.mxu0 %v530
        %596 = vmatprep.subr.bf16.mxu0 0
        %597 = vmatpush1.bf16.msra.mxu0 %v531
        %598 = vmatprep.subr.bf16.mxu0 0
        %599 = vmatpush1.bf16.msra.mxu0 %v532
        %600 = vmatprep.subr.bf16.mxu0 0
        %601 = vmatpush1.bf16.msra.mxu0 %v533
        %602 = vmatprep.subr.bf16.mxu0 0
        %603 = vmatpush1.bf16.msra.mxu0 %v534
        %604 = vmatprep.subr.bf16.mxu0 0
        %605 = vmatpush1.bf16.msra.mxu0 %v535
        %606 = vmatprep.subr.bf16.mxu0 0
        %607 = vmatpush1.bf16.msra.mxu0 %v536
        %608 = vmatprep.subr.bf16.mxu0 0
        %609 = vmatpush1.bf16.msra.mxu0 %v537
        %610 = vmatprep.subr.bf16.mxu0 0
        %611 = vmatpush1.bf16.msra.mxu0 %v538
        %612 = vmatprep.subr.bf16.mxu0 0
        %613 = vmatpush1.bf16.msra.mxu0 %v539
        %614 = vmatprep.subr.bf16.mxu0 0
        %615 = vmatpush1.bf16.msra.mxu0 %v540
        %616 = vmatprep.subr.bf16.mxu0 0
        %617 = vmatpush1.bf16.msra.mxu0 %v541
        %618 = vmatprep.subr.bf16.mxu0 0
        %619 = vmatpush1.bf16.msra.mxu0 %v542
        %620 = vmatprep.subr.bf16.mxu0 0
        %621 = vmatpush1.bf16.msra.mxu0 %v543
        %622 = vmatprep.subr.bf16.mxu0 0
        %623 = vmatpush1.bf16.msra.mxu0 %v544
        %624 = vmatprep.subr.bf16.mxu0 0
        %625 = vmatpush1.bf16.msra.mxu0 %v545
        %626 = vmatprep.mubr.bf16.mxu0 %v270
        %627 = vmatmul.mubr.bf16.gmra.mrb[0].mxu0 %v269
        %v628 = vpop.f32.mrb[0].mxu0
        %v629 = vadd.f32 0.0, %v628
        %v630 = vpop.f32.mrb[0].mxu0
        %v631 = vpop.f32.mrb[0].mxu0
        %v632 = vadd.f32 0.0, %v631
        %v633 = vpop.f32.mrb[0].mxu0
        %634 = vdwg.mxu0
        %635 = vmatprep.subr.bf16.mxu0 0
        %636 = vmatpush1.bf16.msra.mxu0 %v546
        %637 = vmatprep.subr.bf16.mxu0 0
        %638 = vmatpush1.bf16.msra.mxu0 %v547
        %639 = vmatprep.subr.bf16.mxu0 0
        %640 = vmatpush1.bf16.msra.mxu0 %v548
        %641 = vmatprep.subr.bf16.mxu0 0
        %642 = vmatpush1.bf16.msra.mxu0 %v549
        %643 = vmatprep.subr.bf16.mxu0 0
        %644 = vmatpush1.bf16.msra.mxu0 %v550
        %645 = vmatprep.subr.bf16.mxu0 0
        %646 = vmatpush1.bf16.msra.mxu0 %v551
        %647 = vmatprep.subr.bf16.mxu0 0
        %648 = vmatpush1.bf16.msra.mxu0 %v552
        %649 = vmatprep.subr.bf16.mxu0 0
        %650 = vmatpush1.bf16.msra.mxu0 %v553
        %651 = vmatprep.subr.bf16.mxu0 0
        %652 = vmatpush1.bf16.msra.mxu0 %v554
        %653 = vmatprep.subr.bf16.mxu0 0
        %654 = vmatpush1.bf16.msra.mxu0 %v555
        %655 = vmatprep.subr.bf16.mxu0 0
        %656 = vmatpush1.bf16.msra.mxu0 %v556
        %657 = vmatprep.subr.bf16.mxu0 0
        %658 = vmatpush1.bf16.msra.mxu0 %v557
        %659 = vmatprep.subr.bf16.mxu0 0
        %660 = vmatpush1.bf16.msra.mxu0 %v558
        %661 = vmatprep.subr.bf16.mxu0 0
        %662 = vmatpush1.bf16.msra.mxu0 %v559
        %663 = vmatprep.subr.bf16.mxu0 0
        %664 = vmatpush1.bf16.msra.mxu0 %v560
        %665 = vmatprep.subr.bf16.mxu0 0
        %666 = vmatpush1.bf16.msra.mxu0 %v561
        %667 = vmatprep.mubr.bf16.mxu0 %v272
        %668 = vmatmul.mubr.bf16.gmra.mrb[0].mxu0 %v271
        %v669 = vpop.f32.mrb[0].mxu0
        %v670 = vadd.f32 %v629, %v669
        %v671 = vpop.f32.mrb[0].mxu0
        %v672 = vpop.f32.mrb[0].mxu0
        %v673 = vadd.f32 %v632, %v672
        %v674 = vpop.f32.mrb[0].mxu0
        %675 = vdwg.mxu0
        %v740 = vunpack.c.l.b16 %v273
        %v741 = vunpack.c.l.b16 %v274
        %v742 = vunpack.c.l.b16 %v275
        %v743 = vunpack.c.l.b16 %v276
        %v744 = vunpack.c.l.b16 %v277
        %v745 = vunpack.c.l.b16 %v278
        %v746 = vunpack.c.l.b16 %v279
        %v747 = vunpack.c.l.b16 %v280
        %v748 = vunpack.c.l.b16 %v281
        %v749 = vunpack.c.l.b16 %v282
        %v750 = vunpack.c.l.b16 %v283
        %v751 = vunpack.c.l.b16 %v284
        %v752 = vunpack.c.l.b16 %v285
        %v753 = vunpack.c.l.b16 %v286
        %v754 = vunpack.c.l.b16 %v287
        %v755 = vunpack.c.l.b16 %v288
        %v756 = vunpack.c.l.b16 %v289
        %v757 = vunpack.c.l.b16 %v290
        %v758 = vunpack.c.l.b16 %v291
        %v759 = vunpack.c.l.b16 %v292
        %v760 = vunpack.c.l.b16 %v293
        %v761 = vunpack.c.l.b16 %v294
        %v762 = vunpack.c.l.b16 %v295
        %v763 = vunpack.c.l.b16 %v296
        %v764 = vunpack.c.l.b16 %v297
        %v765 = vunpack.c.l.b16 %v298
        %v766 = vunpack.c.l.b16 %v299
        %v767 = vunpack.c.l.b16 %v300
        %v768 = vunpack.c.l.b16 %v301
        %v769 = vunpack.c.l.b16 %v302
        %v770 = vunpack.c.l.b16 %v303
        %v771 = vunpack.c.l.b16 %v304
        %v772 = vunpack.c.l.b16 %v305
        %v773 = vunpack.c.l.b16 %v306
        %v774 = vunpack.c.l.b16 %v307
        %v775 = vunpack.c.l.b16 %v308
        %v776 = vunpack.c.l.b16 %v309
        %v777 = vunpack.c.l.b16 %v310
        %v778 = vunpack.c.l.b16 %v311
        %v779 = vunpack.c.l.b16 %v312
        %v780 = vunpack.c.l.b16 %v313
        %v781 = vunpack.c.l.b16 %v314
        %v782 = vunpack.c.l.b16 %v315
        %v783 = vunpack.c.l.b16 %v316
        %v784 = vunpack.c.l.b16 %v317
        %v785 = vunpack.c.l.b16 %v318
        %v786 = vunpack.c.l.b16 %v319
        %v787 = vunpack.c.l.b16 %v320
        %v788 = vunpack.c.l.b16 %v321
        %v789 = vunpack.c.l.b16 %v322
        %v790 = vunpack.c.l.b16 %v323
        %v791 = vunpack.c.l.b16 %v324
        %v792 = vunpack.c.l.b16 %v325
        %v793 = vunpack.c.l.b16 %v326
        %v794 = vunpack.c.l.b16 %v327
        %v795 = vunpack.c.l.b16 %v328
        %v796 = vunpack.c.l.b16 %v329
        %v797 = vunpack.c.l.b16 %v330
        %v798 = vunpack.c.l.b16 %v331
        %v799 = vunpack.c.l.b16 %v332
        %v800 = vunpack.c.l.b16 %v333
        %v801 = vunpack.c.l.b16 %v334
        %v802 = vunpack.c.l.b16 %v335
        %v803 = vunpack.c.l.b16 %v336
        %v804 = vpack.c.b16 %v741, %v740
        %v805 = vpack.c.b16 %v743, %v742
        %v806 = vpack.c.b16 %v745, %v744
        %v807 = vpack.c.b16 %v747, %v746
        %v808 = vpack.c.b16 %v749, %v748
        %v809 = vpack.c.b16 %v751, %v750
        %v810 = vpack.c.b16 %v753, %v752
        %v811 = vpack.c.b16 %v755, %v754
        %v812 = vpack.c.b16 %v757, %v756
        %v813 = vpack.c.b16 %v759, %v758
        %v814 = vpack.c.b16 %v761, %v760
        %v815 = vpack.c.b16 %v763, %v762
        %v816 = vpack.c.b16 %v765, %v764
        %v817 = vpack.c.b16 %v767, %v766
        %v818 = vpack.c.b16 %v769, %v768
        %v819 = vpack.c.b16 %v771, %v770
        %v820 = vpack.c.b16 %v773, %v772
        %v821 = vpack.c.b16 %v775, %v774
        %v822 = vpack.c.b16 %v777, %v776
        %v823 = vpack.c.b16 %v779, %v778
        %v824 = vpack.c.b16 %v781, %v780
        %v825 = vpack.c.b16 %v783, %v782
        %v826 = vpack.c.b16 %v785, %v784
        %v827 = vpack.c.b16 %v787, %v786
        %v828 = vpack.c.b16 %v789, %v788
        %v829 = vpack.c.b16 %v791, %v790
        %v830 = vpack.c.b16 %v793, %v792
        %v831 = vpack.c.b16 %v795, %v794
        %v832 = vpack.c.b16 %v797, %v796
        %v833 = vpack.c.b16 %v799, %v798
        %v834 = vpack.c.b16 %v801, %v800
        %v835 = vpack.c.b16 %v803, %v802
        %868 = vmatprep.subr.bf16.mxu0 0
        %869 = vmatpush1.bf16.msra.mxu0 %v804
        %870 = vmatprep.subr.bf16.mxu0 0
        %871 = vmatpush1.bf16.msra.mxu0 %v805
        %872 = vmatprep.subr.bf16.mxu0 0
        %873 = vmatpush1.bf16.msra.mxu0 %v806
        %874 = vmatprep.subr.bf16.mxu0 0
        %875 = vmatpush1.bf16.msra.mxu0 %v807
        %876 = vmatprep.subr.bf16.mxu0 0
        %877 = vmatpush1.bf16.msra.mxu0 %v808
        %878 = vmatprep.subr.bf16.mxu0 0
        %879 = vmatpush1.bf16.msra.mxu0 %v809
        %880 = vmatprep.subr.bf16.mxu0 0
        %881 = vmatpush1.bf16.msra.mxu0 %v810
        %882 = vmatprep.subr.bf16.mxu0 0
        %883 = vmatpush1.bf16.msra.mxu0 %v811
        %884 = vmatprep.subr.bf16.mxu0 0
        %885 = vmatpush1.bf16.msra.mxu0 %v812
        %886 = vmatprep.subr.bf16.mxu0 0
        %887 = vmatpush1.bf16.msra.mxu0 %v813
        %888 = vmatprep.subr.bf16.mxu0 0
        %889 = vmatpush1.bf16.msra.mxu0 %v814
        %890 = vmatprep.subr.bf16.mxu0 0
        %891 = vmatpush1.bf16.msra.mxu0 %v815
        %892 = vmatprep.subr.bf16.mxu0 0
        %893 = vmatpush1.bf16.msra.mxu0 %v816
        %894 = vmatprep.subr.bf16.mxu0 0
        %895 = vmatpush1.bf16.msra.mxu0 %v817
        %896 = vmatprep.subr.bf16.mxu0 0
        %897 = vmatpush1.bf16.msra.mxu0 %v818
        %898 = vmatprep.subr.bf16.mxu0 0
        %899 = vmatpush1.bf16.msra.mxu0 %v819
        %900 = vmatprep.mubr.bf16.mxu0 %v270
        %901 = vmatmul.mubr.bf16.gmra.mrb[0].mxu0 %v269
        %v902 = vpop.f32.mrb[0].mxu0
        %v903 = vadd.f32 %v670, %v902
        %v904 = vpop.f32.mrb[0].mxu0
        %v905 = vpop.f32.mrb[0].mxu0
        %v906 = vadd.f32 %v673, %v905
        %v907 = vpop.f32.mrb[0].mxu0
        %908 = vdwg.mxu0
        %909 = vmatprep.subr.bf16.mxu0 0
        %910 = vmatpush1.bf16.msra.mxu0 %v820
        %911 = vmatprep.subr.bf16.mxu0 0
        %912 = vmatpush1.bf16.msra.mxu0 %v821
        %913 = vmatprep.subr.bf16.mxu0 0
        %914 = vmatpush1.bf16.msra.mxu0 %v822
        %915 = vmatprep.subr.bf16.mxu0 0
        %916 = vmatpush1.bf16.msra.mxu0 %v823
        %917 = vmatprep.subr.bf16.mxu0 0
        %918 = vmatpush1.bf16.msra.mxu0 %v824
        %919 = vmatprep.subr.bf16.mxu0 0
        %920 = vmatpush1.bf16.msra.mxu0 %v825
        %921 = vmatprep.subr.bf16.mxu0 0
        %922 = vmatpush1.bf16.msra.mxu0 %v826
        %923 = vmatprep.subr.bf16.mxu0 0
        %924 = vmatpush1.bf16.msra.mxu0 %v827
        %925 = vmatprep.subr.bf16.mxu0 0
        %926 = vmatpush1.bf16.msra.mxu0 %v828
        %927 = vmatprep.subr.bf16.mxu0 0
        %928 = vmatpush1.bf16.msra.mxu0 %v829
        %929 = vmatprep.subr.bf16.mxu0 0
        %930 = vmatpush1.bf16.msra.mxu0 %v830
        %931 = vmatprep.subr.bf16.mxu0 0
        %932 = vmatpush1.bf16.msra.mxu0 %v831
        %933 = vmatprep.subr.bf16.mxu0 0
        %934 = vmatpush1.bf16.msra.mxu0 %v832
        %935 = vmatprep.subr.bf16.mxu0 0
        %936 = vmatpush1.bf16.msra.mxu0 %v833
        %937 = vmatprep.subr.bf16.mxu0 0
        %938 = vmatpush1.bf16.msra.mxu0 %v834
        %939 = vmatprep.subr.bf16.mxu0 0
        %940 = vmatpush1.bf16.msra.mxu0 %v835
        %941 = vmatprep.mubr.bf16.mxu0 %v272
        %942 = vmatmul.mubr.bf16.gmra.mrb[0].mxu0 %v271
        %v943 = vpop.f32.mrb[0].mxu0
        %v944 = vadd.f32 %v903, %v943
        %v945 = vpop.f32.mrb[0].mxu0
        %v946 = vpop.f32.mrb[0].mxu0
        %v947 = vadd.f32 %v906, %v946
        %v948 = vpop.f32.mrb[0].mxu0
        %949 = vdwg.mxu0
        %s950 = scalar_lea.vmem [#allocation2], 512
        %v951 = vld [vmem:[%s950] sm:$0xf]
        %v952 = vld [vmem:[%s950 + $0x4] sm:$0xf]
        %v953 = vld [vmem:[%s950 + $0x8] sm:$0xf]
        %v954 = vld [vmem:[%s950 + $0xc] sm:$0xf]
        %v955 = vld [vmem:[%s950 + $0x10] sm:$0xf]
        %v956 = vld [vmem:[%s950 + $0x14] sm:$0xf]
        %v957 = vld [vmem:[%s950 + $0x18] sm:$0xf]
        %v958 = vld [vmem:[%s950 + $0x1c] sm:$0xf]
        %v959 = vld [vmem:[%s950 + $0x20] sm:$0xf]
        %v960 = vld [vmem:[%s950 + $0x24] sm:$0xf]
        %v961 = vld [vmem:[%s950 + $0x28] sm:$0xf]
        %v962 = vld [vmem:[%s950 + $0x2c] sm:$0xf]
        %v963 = vld [vmem:[%s950 + $0x30] sm:$0xf]
        %v964 = vld [vmem:[%s950 + $0x34] sm:$0xf]
        %v965 = vld [vmem:[%s950 + $0x38] sm:$0xf]
        %v966 = vld [vmem:[%s950 + $0x3c] sm:$0xf]
        %v967 = vld [vmem:[%s950 + $0x40] sm:$0xf]
        %v968 = vld [vmem:[%s950 + $0x44] sm:$0xf]
        %v969 = vld [vmem:[%s950 + $0x48] sm:$0xf]
        %v970 = vld [vmem:[%s950 + $0x4c] sm:$0xf]
        %v971 = vld [vmem:[%s950 + $0x50] sm:$0xf]
        %v972 = vld [vmem:[%s950 + $0x54] sm:$0xf]
        %v973 = vld [vmem:[%s950 + $0x58] sm:$0xf]
        %v974 = vld [vmem:[%s950 + $0x5c] sm:$0xf]
        %v975 = vld [vmem:[%s950 + $0x60] sm:$0xf]
        %v976 = vld [vmem:[%s950 + $0x64] sm:$0xf]
        %v977 = vld [vmem:[%s950 + $0x68] sm:$0xf]
        %v978 = vld [vmem:[%s950 + $0x6c] sm:$0xf]
        %v979 = vld [vmem:[%s950 + $0x70] sm:$0xf]
        %v980 = vld [vmem:[%s950 + $0x74] sm:$0xf]
        %v981 = vld [vmem:[%s950 + $0x78] sm:$0xf]
        %v982 = vld [vmem:[%s950 + $0x7c] sm:$0xf]
        %v983 = vld [vmem:[%s950 + $0x80] sm:$0xf]
        %v984 = vld [vmem:[%s950 + $0x84] sm:$0xf]
        %v985 = vld [vmem:[%s950 + $0x88] sm:$0xf]
        %v986 = vld [vmem:[%s950 + $0x8c] sm:$0xf]
        %v987 = vld [vmem:[%s950 + $0x90] sm:$0xf]
        %v988 = vld [vmem:[%s950 + $0x94] sm:$0xf]
        %v989 = vld [vmem:[%s950 + $0x98] sm:$0xf]
        %v990 = vld [vmem:[%s950 + $0x9c] sm:$0xf]
        %v991 = vld [vmem:[%s950 + $0xa0] sm:$0xf]
        %v992 = vld [vmem:[%s950 + $0xa4] sm:$0xf]
        %v993 = vld [vmem:[%s950 + $0xa8] sm:$0xf]
        %v994 = vld [vmem:[%s950 + $0xac] sm:$0xf]
        %v995 = vld [vmem:[%s950 + $0xb0] sm:$0xf]
        %v996 = vld [vmem:[%s950 + $0xb4] sm:$0xf]
        %v997 = vld [vmem:[%s950 + $0xb8] sm:$0xf]
        %v998 = vld [vmem:[%s950 + $0xbc] sm:$0xf]
        %v999 = vld [vmem:[%s950 + $0xc0] sm:$0xf]
        %v1000 = vld [vmem:[%s950 + $0xc4] sm:$0xf]
        %v1001 = vld [vmem:[%s950 + $0xc8] sm:$0xf]
        %v1002 = vld [vmem:[%s950 + $0xcc] sm:$0xf]
        %v1003 = vld [vmem:[%s950 + $0xd0] sm:$0xf]
        %v1004 = vld [vmem:[%s950 + $0xd4] sm:$0xf]
        %v1005 = vld [vmem:[%s950 + $0xd8] sm:$0xf]
        %v1006 = vld [vmem:[%s950 + $0xdc] sm:$0xf]
        %v1007 = vld [vmem:[%s950 + $0xe0] sm:$0xf]
        %v1008 = vld [vmem:[%s950 + $0xe4] sm:$0xf]
        %v1009 = vld [vmem:[%s950 + $0xe8] sm:$0xf]
        %v1010 = vld [vmem:[%s950 + $0xec] sm:$0xf]
        %v1011 = vld [vmem:[%s950 + $0xf0] sm:$0xf]
        %v1012 = vld [vmem:[%s950 + $0xf4] sm:$0xf]
        %v1013 = vld [vmem:[%s950 + $0xf8] sm:$0xf]
        %v1014 = vld [vmem:[%s950 + $0xfc] sm:$0xf]
        %v1079 = vunpack.c.l.b16 %v951
        %v1080 = vunpack.c.l.b16 %v952
        %v1081 = vunpack.c.l.b16 %v953
        %v1082 = vunpack.c.l.b16 %v954
        %v1083 = vunpack.c.l.b16 %v955
        %v1084 = vunpack.c.l.b16 %v956
        %v1085 = vunpack.c.l.b16 %v957
        %v1086 = vunpack.c.l.b16 %v958
        %v1087 = vunpack.c.l.b16 %v959
        %v1088 = vunpack.c.l.b16 %v960
        %v1089 = vunpack.c.l.b16 %v961
        %v1090 = vunpack.c.l.b16 %v962
        %v1091 = vunpack.c.l.b16 %v963
        %v1092 = vunpack.c.l.b16 %v964
        %v1093 = vunpack.c.l.b16 %v965
        %v1094 = vunpack.c.l.b16 %v966
        %v1095 = vunpack.c.l.b16 %v967
        %v1096 = vunpack.c.l.b16 %v968
        %v1097 = vunpack.c.l.b16 %v969
        %v1098 = vunpack.c.l.b16 %v970
        %v1099 = vunpack.c.l.b16 %v971
        %v1100 = vunpack.c.l.b16 %v972
        %v1101 = vunpack.c.l.b16 %v973
        %v1102 = vunpack.c.l.b16 %v974
        %v1103 = vunpack.c.l.b16 %v975
        %v1104 = vunpack.c.l.b16 %v976
        %v1105 = vunpack.c.l.b16 %v977
        %v1106 = vunpack.c.l.b16 %v978
        %v1107 = vunpack.c.l.b16 %v979
        %v1108 = vunpack.c.l.b16 %v980
        %v1109 = vunpack.c.l.b16 %v981
        %v1110 = vunpack.c.l.b16 %v982
        %v1111 = vunpack.c.l.b16 %v983
        %v1112 = vunpack.c.l.b16 %v984
        %v1113 = vunpack.c.l.b16 %v985
        %v1114 = vunpack.c.l.b16 %v986
        %v1115 = vunpack.c.l.b16 %v987
        %v1116 = vunpack.c.l.b16 %v988
        %v1117 = vunpack.c.l.b16 %v989
        %v1118 = vunpack.c.l.b16 %v990
        %v1119 = vunpack.c.l.b16 %v991
        %v1120 = vunpack.c.l.b16 %v992
        %v1121 = vunpack.c.l.b16 %v993
        %v1122 = vunpack.c.l.b16 %v994
        %v1123 = vunpack.c.l.b16 %v995
        %v1124 = vunpack.c.l.b16 %v996
        %v1125 = vunpack.c.l.b16 %v997
        %v1126 = vunpack.c.l.b16 %v998
        %v1127 = vunpack.c.l.b16 %v999
        %v1128 = vunpack.c.l.b16 %v1000
        %v1129 = vunpack.c.l.b16 %v1001
        %v1130 = vunpack.c.l.b16 %v1002
        %v1131 = vunpack.c.l.b16 %v1003
        %v1132 = vunpack.c.l.b16 %v1004
        %v1133 = vunpack.c.l.b16 %v1005
        %v1134 = vunpack.c.l.b16 %v1006
        %v1135 = vunpack.c.l.b16 %v1007
        %v1136 = vunpack.c.l.b16 %v1008
        %v1137 = vunpack.c.l.b16 %v1009
        %v1138 = vunpack.c.l.b16 %v1010
        %v1139 = vunpack.c.l.b16 %v1011
        %v1140 = vunpack.c.l.b16 %v1012
        %v1141 = vunpack.c.l.b16 %v1013
        %v1142 = vunpack.c.l.b16 %v1014
        %v1143 = vpack.c.b16 %v1080, %v1079
        %v1144 = vpack.c.b16 %v1082, %v1081
        %v1145 = vpack.c.b16 %v1084, %v1083
        %v1146 = vpack.c.b16 %v1086, %v1085
        %v1147 = vpack.c.b16 %v1088, %v1087
        %v1148 = vpack.c.b16 %v1090, %v1089
        %v1149 = vpack.c.b16 %v1092, %v1091
        %v1150 = vpack.c.b16 %v1094, %v1093
        %v1151 = vpack.c.b16 %v1096, %v1095
        %v1152 = vpack.c.b16 %v1098, %v1097
        %v1153 = vpack.c.b16 %v1100, %v1099
        %v1154 = vpack.c.b16 %v1102, %v1101
        %v1155 = vpack.c.b16 %v1104, %v1103
        %v1156 = vpack.c.b16 %v1106, %v1105
        %v1157 = vpack.c.b16 %v1108, %v1107
        %v1158 = vpack.c.b16 %v1110, %v1109
        %v1159 = vpack.c.b16 %v1112, %v1111
        %v1160 = vpack.c.b16 %v1114, %v1113
        %v1161 = vpack.c.b16 %v1116, %v1115
        %v1162 = vpack.c.b16 %v1118, %v1117
        %v1163 = vpack.c.b16 %v1120, %v1119
        %v1164 = vpack.c.b16 %v1122, %v1121
        %v1165 = vpack.c.b16 %v1124, %v1123
        %v1166 = vpack.c.b16 %v1126, %v1125
        %v1167 = vpack.c.b16 %v1128, %v1127
        %v1168 = vpack.c.b16 %v1130, %v1129
        %v1169 = vpack.c.b16 %v1132, %v1131
        %v1170 = vpack.c.b16 %v1134, %v1133
        %v1171 = vpack.c.b16 %v1136, %v1135
        %v1172 = vpack.c.b16 %v1138, %v1137
        %v1173 = vpack.c.b16 %v1140, %v1139
        %v1174 = vpack.c.b16 %v1142, %v1141
        %1207 = vmatprep.subr.bf16.mxu0 0
        %1208 = vmatpush1.bf16.msra.mxu0 %v1143
        %1209 = vmatprep.subr.bf16.mxu0 0
        %1210 = vmatpush1.bf16.msra.mxu0 %v1144
        %1211 = vmatprep.subr.bf16.mxu0 0
        %1212 = vmatpush1.bf16.msra.mxu0 %v1145
        %1213 = vmatprep.subr.bf16.mxu0 0
        %1214 = vmatpush1.bf16.msra.mxu0 %v1146
        %1215 = vmatprep.subr.bf16.mxu0 0
        %1216 = vmatpush1.bf16.msra.mxu0 %v1147
        %1217 = vmatprep.subr.bf16.mxu0 0
        %1218 = vmatpush1.bf16.msra.mxu0 %v1148
        %1219 = vmatprep.subr.bf16.mxu0 0
        %1220 = vmatpush1.bf16.msra.mxu0 %v1149
        %1221 = vmatprep.subr.bf16.mxu0 0
        %1222 = vmatpush1.bf16.msra.mxu0 %v1150
        %1223 = vmatprep.subr.bf16.mxu0 0
        %1224 = vmatpush1.bf16.msra.mxu0 %v1151
        %1225 = vmatprep.subr.bf16.mxu0 0
        %1226 = vmatpush1.bf16.msra.mxu0 %v1152
        %1227 = vmatprep.subr.bf16.mxu0 0
        %1228 = vmatpush1.bf16.msra.mxu0 %v1153
        %1229 = vmatprep.subr.bf16.mxu0 0
        %1230 = vmatpush1.bf16.msra.mxu0 %v1154
        %1231 = vmatprep.subr.bf16.mxu0 0
        %1232 = vmatpush1.bf16.msra.mxu0 %v1155
        %1233 = vmatprep.subr.bf16.mxu0 0
        %1234 = vmatpush1.bf16.msra.mxu0 %v1156
        %1235 = vmatprep.subr.bf16.mxu0 0
        %1236 = vmatpush1.bf16.msra.mxu0 %v1157
        %1237 = vmatprep.subr.bf16.mxu0 0
        %1238 = vmatpush1.bf16.msra.mxu0 %v1158
        %1239 = vmatprep.mubr.bf16.mxu0 %v270
        %1240 = vmatmul.mubr.bf16.gmra.mrb[0].mxu0 %v269
        %v1241 = vpop.f32.mrb[0].mxu0
        %v1242 = vadd.f32 0.0, %v1241
        %v1243 = vpop.f32.mrb[0].mxu0
        %v1244 = vpop.f32.mrb[0].mxu0
        %v1245 = vadd.f32 0.0, %v1244
        %v1246 = vpop.f32.mrb[0].mxu0
        %1247 = vdwg.mxu0
        %1248 = vmatprep.subr.bf16.mxu0 0
        %1249 = vmatpush1.bf16.msra.mxu0 %v1159
        %1250 = vmatprep.subr.bf16.mxu0 0
        %1251 = vmatpush1.bf16.msra.mxu0 %v1160
        %1252 = vmatprep.subr.bf16.mxu0 0
        %1253 = vmatpush1.bf16.msra.mxu0 %v1161
        %1254 = vmatprep.subr.bf16.mxu0 0
        %1255 = vmatpush1.bf16.msra.mxu0 %v1162
        %1256 = vmatprep.subr.bf16.mxu0 0
        %1257 = vmatpush1.bf16.msra.mxu0 %v1163
        %1258 = vmatprep.subr.bf16.mxu0 0
        %1259 = vmatpush1.bf16.msra.mxu0 %v1164
        %1260 = vmatprep.subr.bf16.mxu0 0
        %1261 = vmatpush1.bf16.msra.mxu0 %v1165
        %1262 = vmatprep.subr.bf16.mxu0 0
        %1263 = vmatpush1.bf16.msra.mxu0 %v1166
        %1264 = vmatprep.subr.bf16.mxu0 0
        %1265 = vmatpush1.bf16.msra.mxu0 %v1167
        %1266 = vmatprep.subr.bf16.mxu0 0
        %1267 = vmatpush1.bf16.msra.mxu0 %v1168
        %1268 = vmatprep.subr.bf16.mxu0 0
        %1269 = vmatpush1.bf16.msra.mxu0 %v1169
        %1270 = vmatprep.subr.bf16.mxu0 0
        %1271 = vmatpush1.bf16.msra.mxu0 %v1170
        %1272 = vmatprep.subr.bf16.mxu0 0
        %1273 = vmatpush1.bf16.msra.mxu0 %v1171
        %1274 = vmatprep.subr.bf16.mxu0 0
        %1275 = vmatpush1.bf16.msra.mxu0 %v1172
        %1276 = vmatprep.subr.bf16.mxu0 0
        %1277 = vmatpush1.bf16.msra.mxu0 %v1173
        %1278 = vmatprep.subr.bf16.mxu0 0
        %1279 = vmatpush1.bf16.msra.mxu0 %v1174
        %1280 = vmatprep.mubr.bf16.mxu0 %v272
        %1281 = vmatmul.mubr.bf16.gmra.mrb[0].mxu0 %v271
        %v1282 = vpop.f32.mrb[0].mxu0
        %v1283 = vadd.f32 %v1242, %v1282
        %v1284 = vpop.f32.mrb[0].mxu0
        %v1285 = vpop.f32.mrb[0].mxu0
        %v1286 = vadd.f32 %v1245, %v1285
        %v1287 = vpop.f32.mrb[0].mxu0
        %1288 = vdwg.mxu0
        %v1289 = vadd.f32 %v944, %v1283
        %v1290 = vadd.f32 %v947, %v1286
        %v1291 = vld [vmem:[%s206] sm:$0xff]
        %v1292 = vld [vmem:[%s206 + $0x8] sm:$0xff]
        %v1293 = vadd.f32 %v1291, %v1289
        %v1294 = vadd.f32 %v1292, %v1290
        %1295 = vst [vmem:[%s195] sm:$0xff] %v1293
        %1296 = vst [vmem:[%s195 + $0x8] sm:$0xff] %v1294
        %s1297 = sand.u32 %s99, 1
        %s1298 = scalar_lea.sflag [#allocation4], %s1297
        %s1299 = sand.u32 %s99, 1
        %s1300 = smul.addr %s1299, 16
        %s1301 = scalar_lea.vmem [#allocation5], %s1300
        // Predicated region
        $region37: #{tpu_custom_call.1} parent=31 // pred_check
          %p1302 = pneg %p109
        $region38: #{tpu_custom_call.1} parent=31 // pred_check_branch
          %1304 = sbr.rel (%p1302) target = $region40
        $region39: #{tpu_custom_call.1} parent=31 // pred_region
          %s1305 = smul.u32 2, %s18
          %s1307 = ssub.s32 256, 256
          %1308 = vsyncadd %s1298, %s1307
          %s1309 = smul.addr %s1305, 128
          %s1310 = scalar_lea.hbm %s3, %s1309
          %s1311 = sshll.u32 %s1301, 4
          %s1312 = int_to_ptr.vmem [resolvable:$true] %s1311
          %1317 = dma.vmem_to_hbm [thread:$0]  %s1312, 256, %s1310, %s1298, 128, 128, 8
        $region40: #{tpu_custom_call.1} parent=31 // pred_fallthru
          _
      $region32: #{tpu_custom_call.1} parent=5 // pred_fallthru
        _
      %p1318 = scmp.le.s32.totalorder 2, %s13
      // Predicated region
      $region41: #{tpu_custom_call.1} parent=5 // pred_check
        %p1319 = pneg %p1318
      $region42: #{tpu_custom_call.1} parent=5 // pred_check_branch
        %1321 = sbr.rel (%p1319) target = $region44
      $region43: #{tpu_custom_call.1} parent=5 // pred_region
        %s1322 = ssub.s32 %s13, 2
        // Predicated region
        $region45: #{tpu_custom_call.1} parent=43 // pred_check
          %p1323 = pneg %p115
        $region46: #{tpu_custom_call.1} parent=43 // pred_check_branch
          %1325 = sbr.rel (%p1323) target = $region48
        $region47: #{tpu_custom_call.1} parent=43 // pred_region
          %s1326 = sand.u32 %s100, 1
          %s1327 = scalar_lea.sflag [#allocation4], %s1326
          %s1328 = sand.u32 %s100, 1
          %s1329 = smul.addr %s1328, 16
          %s1330 = scalar_lea.vmem [#allocation5], %s1329
          %1331 = dma.done %s1327, 256
        $region48: #{tpu_custom_call.1} parent=43 // pred_fallthru
          _
      $region44: #{tpu_custom_call.1} parent=5 // pred_fallthru
        _
    $region6: #{tpu_custom_call.1} parent=1 // loop_footer
      %s17 = sadd.s32 1, %s13
    $region7: #{tpu_custom_call.1} parent=1 // loop_footer_branch
      %12 = sbr.rel target = $region3
    $region8: #{tpu_custom_call.1} parent=1 // loop_exit
      _
    %1332 = vsyncpa [#allocation3], 1
    %s1333 = scalar_lea.sflag [#allocation3], 1
    %1334 = vsyncpa %s1333, 1
    %1335 = vsyncpa [#allocation4], 1
    %s1336 = scalar_lea.sflag [#allocation4], 1
    %1337 = vsyncpa %s1336, 1

</llo_original>
